<compile_context>
chip_gen: v5e
topology: v5e:2x2
jax: 0.10.0
libtpu: 0.0.40
codegen_flags: <defaults>
</compile_context>

<pallas_src>
import math

import jax
import jax.numpy as jnp
from jax.experimental import pallas as pl
from jax.experimental.pallas import tpu as pltpu

DIM = 32        # opt.hiddenSize
N = 8           # session (inputs) length
M = 12          # global-graph node count per session (items_g length), M >= N
B = 2           # batch size
NUM_NODE = 50   # vocabulary size
ALPHA = 0.2     # opt.alpha (LeakyReLU negative slope)

NEG_BIG = -9e15   # torch LocalAggregator mask value (intra-session, no edge)
NEG_INF = -1e30   # session-fold / padding mask: exp() underflows to exactly 0


def _combine_kernel(slab_ref, p_ref, out_ref):
    f32 = jnp.float32
    s, n, d = out_ref.shape            # sessions-per-step, session length, hidden
    r = slab_ref.shape[1]              # s * Mp (padded, folded row count)
    mp = r // s

    # ---- single lane-dense load of the per-step slab, unpack with lane slices ----
    slab = slab_ref[0]                                   # (r, L)
    hg   = slab[:, 0:d]                                  # global item embeddings
    h    = slab[:, d:2 * d]                              # session embeddings (pad rows = 0)
    aout = slab[:, 2 * d:2 * d + r]                      # block-diag A_out
    ain  = slab[:, 2 * d + r:2 * d + 2 * r]              # block-diag A_in
    adjf = slab[:, 2 * d + 2 * r:2 * d + 3 * r]          # adj codes 0..4, -1 = invalid

    # shared-parameter tail block: a0..a3 (4 rows), biases (6 rows), mix a (1 row)
    tail = p_ref[6 * d:6 * d + 16, :]
    a_all = tail[0:4, :]                                 # (4, d)

    # ---- local attention (one fused (4r,d)x(d,r) MXU push) ----
    hs = (a_all[:, None, :] * h[None, :, :]).reshape(4 * r, d)
    e = jax.lax.dot_general(hs, h, (((1,), (1,)), ((), ())),
                            preferred_element_type=f32)  # (4r, r)
    e = jnp.where(e > 0, e, ALPHA * e)                   # LeakyReLU

    att = jnp.where(adjf < 0.0, NEG_INF, NEG_BIG)
    att = jnp.where(adjf == 1.0, e[0 * r:1 * r], att)
    att = jnp.where(adjf == 2.0, e[1 * r:2 * r], att)
    att = jnp.where(adjf == 3.0, e[2 * r:3 * r], att)
    att = jnp.where(adjf == 4.0, e[3 * r:4 * r], att)
    att = att - jnp.max(att, axis=-1, keepdims=True)
    pa = jnp.exp(att)
    pa = pa * pl.reciprocal(jnp.sum(pa, axis=-1, keepdims=True), approx=True)
    h_local = jnp.dot(pa, h, preferred_element_type=f32)            # (r, d)

    # ---- 3-hop global GNN, reassociated: A(xW + b) == (Ax)W + rowsum(A)*b ----
    rs_out = jnp.sum(aout, axis=-1, keepdims=True)       # (r, 1), zero on pad rows
    rs_in = jnp.sum(ain, axis=-1, keepdims=True)
    x = hg
    acc = x
    for hop in range(3):                                 # static unroll
        w_out = p_ref[(2 * hop) * d:(2 * hop + 1) * d, :]
        w_in = p_ref[(2 * hop + 1) * d:(2 * hop + 2) * d, :]
        b_out = tail[4 + 2 * hop:5 + 2 * hop, :]
        b_in = tail[5 + 2 * hop:6 + 2 * hop, :]
        u_out = jnp.dot(aout, x, preferred_element_type=f32)
        u_in = jnp.dot(ain, x, preferred_element_type=f32)
        x = jnp.maximum(
            jnp.dot(u_out, w_out, preferred_element_type=f32)
            + jnp.dot(u_in, w_in, preferred_element_type=f32)
            + rs_out * b_out + rs_in * b_in, 0.0)
        acc = acc + x
    hg_mean = acc * 0.25                                 # mean over [h_g, h1, h2, h3]

    # ---- combine: output = a * h_local + (1 - a) * h_g[:, :N] ----
    a_mix = tail[10:11, :]                               # scalar replicated over lanes
    combined = a_mix * h_local + (1.0 - a_mix) * hg_mean # (r, d)
    out_ref[...] = combined.reshape(s, mp, d)[:, :n, :].astype(out_ref.dtype)


def _tensorcores_per_device():
    """Best-effort TensorCore-per-device count (v7x/v4/v5p expose 2, v5e/v6e 1)."""
    try:
        kind = jax.devices()[0].device_kind.lower()
    except Exception:
        return 1
    if any(t in kind for t in ("v7", "7x", "v5p", "v4")):
        return 2
    return 1


def init_params(key):
    stdv = 1.0 / math.sqrt(DIM)

    def u(k, shape):
        return jax.random.uniform(k, shape, jnp.float32, -stdv, stdv)

    keys = jax.random.split(key, 18)
    params = {
        "embedding": u(keys[0], (NUM_NODE, DIM)),
        "a0": u(keys[1], (1, DIM)),
        "a1": u(keys[2], (1, DIM)),
        "a2": u(keys[3], (1, DIM)),
        "a3": u(keys[4], (1, DIM)),
        "a": u(keys[5], (1,)),
    }
    ki = 6
    for i in (1, 2, 3):
        params[f"w_out{i}"] = u(keys[ki + 0], (DIM, DIM))
        params[f"b_out{i}"] = u(keys[ki + 1], (1, DIM))
        params[f"w_in{i}"] = u(keys[ki + 2], (DIM, DIM))
        params[f"b_in{i}"] = u(keys[ki + 3], (1, DIM))
        ki += 4
    return params


def combine_graph_forward(params, inputs, adj, mask_item, items, items_g,
                          A_out, A_in, sessions_per_step=None):
    # mask_item is ignored by the (assumed) local aggregator; `items` is unused in forward.
    del mask_item, items
    f32 = jnp.float32

    emb = params["embedding"]
    h = jnp.take(emb, inputs, axis=0).astype(f32)        # (B, N, D) embedding gather (XLA glue)
    h_g = jnp.take(emb, items_g, axis=0).astype(f32)     # (B, M, D)

    B_, N_, D_ = h.shape
    M_ = h_g.shape[1]
    Mp = ((max(M_, N_) + 7) // 8) * 8                    # per-session padded row count

    # Fold whole batch into one grid step on single-TC chips; one session per TC on
    # multi-core chips.  If B grows, keep >= #cores grid steps (so double-buffering
    # re-engages) while stacking many sessions per step to fill MXU rows.
    if sessions_per_step is None:
        steps = min(B_, max(1, _tensorcores_per_device()))
        while B_ % steps:
            steps -= 1
        sessions_per_step = B_ // steps
    S = sessions_per_step
    assert B_ % S == 0
    G = B_ // S
    R = S * Mp
    L = ((2 * D_ + 3 * R + 127) // 128) * 128

    # ---- per-step slab: ONE lane-dense DMA stream instead of 5 tiny ones ----
    hg_p = jnp.pad(h_g, ((0, 0), (0, Mp - M_), (0, 0))).reshape(G, R, D_)
    h_p = jnp.pad(h, ((0, 0), (0, Mp - N_), (0, 0))).reshape(G, R, D_)

    eye = jnp.eye(S, dtype=f32)

    def block_diag(x_bmm):            # (B, Mp, Mp) -> (G, R, R), zeros off-diagonal
        x = x_bmm.reshape(G, S, Mp, Mp)
        return jnp.einsum("gsij,st->gsitj", x, eye).reshape(G, R, R)

    Ao = jnp.pad(A_out.astype(f32), ((0, 0), (0, Mp - M_), (0, Mp - M_)))
    Ai = jnp.pad(A_in.astype(f32), ((0, 0), (0, Mp - M_), (0, Mp - M_)))
    Ao_bd = block_diag(Ao)
    Ai_bd = block_diag(Ai)

    # adj codes (0..4) in the valid NxN region; -1 marks padded / cross-session slots
    # so the kernel masks them with exactly-zero softmax weight.
    adjf = jnp.full((B_, Mp, Mp), -1.0, f32)
    adjf = adjf.at[:, :N_, :N_].set(adj.astype(f32))
    adj_bd = block_diag(adjf + 1.0) - 1.0                # off-diag blocks become -1

    slab = jnp.concatenate([hg_p, h_p, Ao_bd, Ai_bd, adj_bd], axis=-1)
    slab = jnp.pad(slab, ((0, 0), (0, 0), (0, L - slab.shape[-1])))

    # ---- shared parameters: ONE 2-D stream (weights, a-vectors, biases, mix a) ----
    wrows, brows = [], []
    for i in (1, 2, 3):
        wrows += [params[f"w_out{i}"], params[f"w_in{i}"]]
        brows += [params[f"b_out{i}"], params[f"b_in{i}"]]
    arows = [params["a0"], params["a1"], params["a2"], params["a3"]]
    mix_row = jnp.broadcast_to(params["a"].reshape(1, 1), (1, D_))
    pack = jnp.concatenate(wrows + arows + brows + [mix_row], axis=0).astype(f32)
    Rp = 6 * D_ + 16
    pack = jnp.pad(pack, ((0, Rp - pack.shape[0]), (0, 0)))

    return pl.pallas_call(
        _combine_kernel,
        out_shape=jax.ShapeDtypeStruct((B_, N_, D_), jnp.float32),
        grid_spec=pltpu.PrefetchScalarGridSpec(
            num_scalar_prefetch=0,
            grid=(G,),
            in_specs=[
                pl.BlockSpec((1, R, L), lambda g: (g, 0, 0)),   # per-step session slab
                pl.BlockSpec((Rp, D_), lambda g: (0, 0)),       # shared parameter pack
            ],
            out_specs=pl.BlockSpec((S, N_, D_), lambda g: (g, 0, 0)),
        ),
        compiler_params=pltpu.CompilerParams(
            dimension_semantics=("parallel",)),
    )(slab, pack)


if __name__ == "__main__":
    key = jax.random.PRNGKey(0)
    pkey, ikey = jax.random.split(key)
    params = init_params(pkey)

    k1, k2, k3, k4, k5 = jax.random.split(ikey, 5)
    inputs = jax.random.randint(k1, (B, N), 0, NUM_NODE, dtype=jnp.int32)
    items_g = jax.random.randint(k2, (B, M), 0, NUM_NODE, dtype=jnp.int32)
    adj = jax.random.randint(k3, (B, N, N), 0, 5, dtype=jnp.int32)      # edge types 0..4
    mask_item = jnp.ones((B, N), jnp.int32)
    items = inputs
    A_out = jax.random.uniform(k4, (B, M, M), jnp.float32)
    A_in = jax.random.uniform(k5, (B, M, M), jnp.float32)

    out = combine_graph_forward(params, inputs, adj, mask_item, items, items_g, A_out, A_in)
    jax.block_until_ready(out)
    assert out.shape == (B, N, DIM)
    print("KERNEL_OK")
</pallas_src>

<mosaic_0001>
module attributes {stable_mosaic.version = 11 : i64} {
  func.func @_combine_kernel(%arg0: i32, %arg1: memref<1x32x256xf32, #tpu.memory_space<vmem>>, %arg2: memref<208x32xf32, #tpu.memory_space<vmem>>, %arg3: memref<2x8x32xf32, #tpu.memory_space<vmem>>) attributes {dimension_semantics = [#tpu.dimension_semantics<parallel>], iteration_bounds = array<i64: 1>, scalar_prefetch = 0 : i64, scratch_operands = 0 : i64, tpu.core_type = #tpu.core_type<tc>, window_params = [{transform_indices = @transform_0, window_bounds = array<i64: 1, 32, 256>}, {pipeline_mode = #tpu.pipeline_mode<synchronous>, transform_indices = @transform_1, window_bounds = array<i64: 208, 32>}, {transform_indices = @transform_2, window_bounds = array<i64: 2, 8, 32>}]} {
    %c0 = arith.constant 0 : index
    %c0_0 = arith.constant 0 : index
    %c0_1 = arith.constant 0 : index
    %0 = vector.load %arg1[%c0, %c0_0, %c0_1] : memref<1x32x256xf32, #tpu.memory_space<vmem>>, vector<1x32x256xf32>
    %1 = vector.shape_cast %0 : vector<1x32x256xf32> to vector<32x256xf32>
    %2 = vector.extract_strided_slice %1 {offsets = [0, 0], sizes = [32, 32], strides = [1, 1]} : vector<32x256xf32> to vector<32x32xf32>
    %3 = vector.extract_strided_slice %1 {offsets = [0, 32], sizes = [32, 32], strides = [1, 1]} : vector<32x256xf32> to vector<32x32xf32>
    %4 = vector.extract_strided_slice %1 {offsets = [0, 64], sizes = [32, 32], strides = [1, 1]} : vector<32x256xf32> to vector<32x32xf32>
    %5 = vector.extract_strided_slice %1 {offsets = [0, 96], sizes = [32, 32], strides = [1, 1]} : vector<32x256xf32> to vector<32x32xf32>
    %6 = vector.extract_strided_slice %1 {offsets = [0, 128], sizes = [32, 32], strides = [1, 1]} : vector<32x256xf32> to vector<32x32xf32>
    %c192 = arith.constant 192 : index
    %c0_2 = arith.constant 0 : index
    %7 = vector.load %arg2[%c192, %c0_2] : memref<208x32xf32, #tpu.memory_space<vmem>>, vector<16x32xf32>
    %8 = vector.extract_strided_slice %7 {offsets = [0, 0], sizes = [4, 32], strides = [1, 1]} : vector<16x32xf32> to vector<4x32xf32>
    %9 = vector.shape_cast %8 : vector<4x32xf32> to vector<4x1x32xf32>
    %10 = vector.shape_cast %3 : vector<32x32xf32> to vector<1x32x32xf32>
    %11 = vector.broadcast %9 : vector<4x1x32xf32> to vector<4x32x32xf32>
    %12 = vector.broadcast %10 : vector<1x32x32xf32> to vector<4x32x32xf32>
    %13 = arith.mulf %11, %12 : vector<4x32x32xf32>
    %14 = vector.shape_cast %13 : vector<4x32x32xf32> to vector<128x32xf32>
    %cst = arith.constant dense<0.000000e+00> : vector<128x32xf32>
    %15 = tpu.matmul %14, %3, %cst {dimension_numbers = #tpu.dot_dimension_numbers<[1], [1], [0], [0], [0, 0, 1, 0], [], []>} : vector<128x32xf32>, vector<32x32xf32>, vector<128x32xf32> -> vector<128x32xf32>
    %cst_3 = arith.constant 0.000000e+00 : f32
    %16 = vector.broadcast %cst_3 : f32 to vector<128x32xf32>
    %17 = arith.cmpf ogt, %15, %16 : vector<128x32xf32>
    %cst_4 = arith.constant 2.000000e-01 : f32
    %18 = vector.broadcast %cst_4 : f32 to vector<128x32xf32>
    %19 = arith.mulf %18, %15 : vector<128x32xf32>
    %20 = arith.select %17, %15, %19 : vector<128x32xi1>, vector<128x32xf32>
    %cst_5 = arith.constant 0.000000e+00 : f32
    %21 = vector.broadcast %cst_5 : f32 to vector<32x32xf32>
    %22 = arith.cmpf olt, %6, %21 : vector<32x32xf32>
    %cst_6 = arith.constant -1.000000e+30 : f32
    %cst_7 = arith.constant -9.000000e+15 : f32
    %23 = vector.broadcast %cst_6 : f32 to vector<32x32xf32>
    %24 = vector.broadcast %cst_7 : f32 to vector<32x32xf32>
    %25 = arith.select %22, %23, %24 : vector<32x32xi1>, vector<32x32xf32>
    %cst_8 = arith.constant 1.000000e+00 : f32
    %26 = vector.broadcast %cst_8 : f32 to vector<32x32xf32>
    %27 = arith.cmpf oeq, %6, %26 : vector<32x32xf32>
    %28 = vector.extract_strided_slice %20 {offsets = [0, 0], sizes = [32, 32], strides = [1, 1]} : vector<128x32xf32> to vector<32x32xf32>
    %29 = arith.select %27, %28, %25 : vector<32x32xi1>, vector<32x32xf32>
    %cst_9 = arith.constant 2.000000e+00 : f32
    %30 = vector.broadcast %cst_9 : f32 to vector<32x32xf32>
    %31 = arith.cmpf oeq, %6, %30 : vector<32x32xf32>
    %32 = vector.extract_strided_slice %20 {offsets = [32, 0], sizes = [32, 32], strides = [1, 1]} : vector<128x32xf32> to vector<32x32xf32>
    %33 = arith.select %31, %32, %29 : vector<32x32xi1>, vector<32x32xf32>
    %cst_10 = arith.constant 3.000000e+00 : f32
    %34 = vector.broadcast %cst_10 : f32 to vector<32x32xf32>
    %35 = arith.cmpf oeq, %6, %34 : vector<32x32xf32>
    %36 = vector.extract_strided_slice %20 {offsets = [64, 0], sizes = [32, 32], strides = [1, 1]} : vector<128x32xf32> to vector<32x32xf32>
    %37 = arith.select %35, %36, %33 : vector<32x32xi1>, vector<32x32xf32>
    %cst_11 = arith.constant 4.000000e+00 : f32
    %38 = vector.broadcast %cst_11 : f32 to vector<32x32xf32>
    %39 = arith.cmpf oeq, %6, %38 : vector<32x32xf32>
    %40 = vector.extract_strided_slice %20 {offsets = [96, 0], sizes = [32, 32], strides = [1, 1]} : vector<128x32xf32> to vector<32x32xf32>
    %41 = arith.select %39, %40, %37 : vector<32x32xi1>, vector<32x32xf32>
    %cst_12 = arith.constant dense<0xFF800000> : vector<32xf32>
    %42 = vector.multi_reduction <maximumf>, %41, %cst_12 [1] : vector<32x32xf32> to vector<32xf32>
    %43 = vector.shape_cast %42 : vector<32xf32> to vector<32x1xf32>
    %44 = vector.broadcast %43 : vector<32x1xf32> to vector<32x32xf32>
    %45 = arith.subf %41, %44 : vector<32x32xf32>
    %46 = math.exp %45 : vector<32x32xf32>
    %cst_13 = arith.constant dense<0.000000e+00> : vector<32xf32>
    %47 = vector.multi_reduction <add>, %46, %cst_13 [1] : vector<32x32xf32> to vector<32xf32>
    %48 = vector.shape_cast %47 : vector<32xf32> to vector<32x1xf32>
    %49 = tpu.reciprocal %48 {approx = true} : vector<32x1xf32> -> vector<32x1xf32>
    %50 = vector.broadcast %49 : vector<32x1xf32> to vector<32x32xf32>
    %51 = arith.mulf %46, %50 : vector<32x32xf32>
    %cst_14 = arith.constant dense<0.000000e+00> : vector<32x32xf32>
    %52 = tpu.matmul %51, %3, %cst_14 {dimension_numbers = #tpu.dot_dimension_numbers<[1], [0], [0], [1], [0, 0, 1, 1], [], []>} : vector<32x32xf32>, vector<32x32xf32>, vector<32x32xf32> -> vector<32x32xf32>
    %cst_15 = arith.constant dense<0.000000e+00> : vector<32xf32>
    %53 = vector.multi_reduction <add>, %4, %cst_15 [1] : vector<32x32xf32> to vector<32xf32>
    %54 = vector.shape_cast %53 : vector<32xf32> to vector<32x1xf32>
    %cst_16 = arith.constant dense<0.000000e+00> : vector<32xf32>
    %55 = vector.multi_reduction <add>, %5, %cst_16 [1] : vector<32x32xf32> to vector<32xf32>
    %56 = vector.shape_cast %55 : vector<32xf32> to vector<32x1xf32>
    %c0_17 = arith.constant 0 : index
    %c0_18 = arith.constant 0 : index
    %57 = vector.load %arg2[%c0_17, %c0_18] : memref<208x32xf32, #tpu.memory_space<vmem>>, vector<32x32xf32>
    %c32 = arith.constant 32 : index
    %c0_19 = arith.constant 0 : index
    %58 = vector.load %arg2[%c32, %c0_19] : memref<208x32xf32, #tpu.memory_space<vmem>>, vector<32x32xf32>
    %59 = vector.extract_strided_slice %7 {offsets = [4, 0], sizes = [1, 32], strides = [1, 1]} : vector<16x32xf32> to vector<1x32xf32>
    %60 = vector.extract_strided_slice %7 {offsets = [5, 0], sizes = [1, 32], strides = [1, 1]} : vector<16x32xf32> to vector<1x32xf32>
    %cst_20 = arith.constant dense<0.000000e+00> : vector<32x32xf32>
    %61 = tpu.matmul %4, %2, %cst_20 {dimension_numbers = #tpu.dot_dimension_numbers<[1], [0], [0], [1], [0, 0, 1, 1], [], []>} : vector<32x32xf32>, vector<32x32xf32>, vector<32x32xf32> -> vector<32x32xf32>
    %cst_21 = arith.constant dense<0.000000e+00> : vector<32x32xf32>
    %62 = tpu.matmul %5, %2, %cst_21 {dimension_numbers = #tpu.dot_dimension_numbers<[1], [0], [0], [1], [0, 0, 1, 1], [], []>} : vector<32x32xf32>, vector<32x32xf32>, vector<32x32xf32> -> vector<32x32xf32>
    %cst_22 = arith.constant dense<0.000000e+00> : vector<32x32xf32>
    %63 = tpu.matmul %61, %57, %cst_22 {dimension_numbers = #tpu.dot_dimension_numbers<[1], [0], [0], [1], [0, 0, 1, 1], [], []>} : vector<32x32xf32>, vector<32x32xf32>, vector<32x32xf32> -> vector<32x32xf32>
    %cst_23 = arith.constant dense<0.000000e+00> : vector<32x32xf32>
    %64 = tpu.matmul %62, %58, %cst_23 {dimension_numbers = #tpu.dot_dimension_numbers<[1], [0], [0], [1], [0, 0, 1, 1], [], []>} : vector<32x32xf32>, vector<32x32xf32>, vector<32x32xf32> -> vector<32x32xf32>
    %65 = arith.addf %63, %64 : vector<32x32xf32>
    %66 = vector.broadcast %54 : vector<32x1xf32> to vector<32x32xf32>
    %67 = vector.broadcast %59 : vector<1x32xf32> to vector<32x32xf32>
    %68 = arith.mulf %66, %67 : vector<32x32xf32>
    %69 = arith.addf %65, %68 : vector<32x32xf32>
    %70 = vector.broadcast %56 : vector<32x1xf32> to vector<32x32xf32>
    %71 = vector.broadcast %60 : vector<1x32xf32> to vector<32x32xf32>
    %72 = arith.mulf %70, %71 : vector<32x32xf32>
    %73 = arith.addf %69, %72 : vector<32x32xf32>
    %cst_24 = arith.constant 0.000000e+00 : f32
    %74 = vector.broadcast %cst_24 : f32 to vector<32x32xf32>
    %75 = arith.maximumf %73, %74 : vector<32x32xf32>
    %76 = arith.addf %2, %75 : vector<32x32xf32>
    %c64 = arith.constant 64 : index
    %c0_25 = arith.constant 0 : index
    %77 = vector.load %arg2[%c64, %c0_25] : memref<208x32xf32, #tpu.memory_space<vmem>>, vector<32x32xf32>
    %c96 = arith.constant 96 : index
    %c0_26 = arith.constant 0 : index
    %78 = vector.load %arg2[%c96, %c0_26] : memref<208x32xf32, #tpu.memory_space<vmem>>, vector<32x32xf32>
    %79 = vector.extract_strided_slice %7 {offsets = [6, 0], sizes = [1, 32], strides = [1, 1]} : vector<16x32xf32> to vector<1x32xf32>
    %80 = vector.extract_strided_slice %7 {offsets = [7, 0], sizes = [1, 32], strides = [1, 1]} : vector<16x32xf32> to vector<1x32xf32>
    %cst_27 = arith.constant dense<0.000000e+00> : vector<32x32xf32>
    %81 = tpu.matmul %4, %75, %cst_27 {dimension_numbers = #tpu.dot_dimension_numbers<[1], [0], [0], [1], [0, 0, 1, 1], [], []>} : vector<32x32xf32>, vector<32x32xf32>, vector<32x32xf32> -> vector<32x32xf32>
    %cst_28 = arith.constant dense<0.000000e+00> : vector<32x32xf32>
    %82 = tpu.matmul %5, %75, %cst_28 {dimension_numbers = #tpu.dot_dimension_numbers<[1], [0], [0], [1], [0, 0, 1, 1], [], []>} : vector<32x32xf32>, vector<32x32xf32>, vector<32x32xf32> -> vector<32x32xf32>
    %cst_29 = arith.constant dense<0.000000e+00> : vector<32x32xf32>
    %83 = tpu.matmul %81, %77, %cst_29 {dimension_numbers = #tpu.dot_dimension_numbers<[1], [0], [0], [1], [0, 0, 1, 1], [], []>} : vector<32x32xf32>, vector<32x32xf32>, vector<32x32xf32> -> vector<32x32xf32>
    %cst_30 = arith.constant dense<0.000000e+00> : vector<32x32xf32>
    %84 = tpu.matmul %82, %78, %cst_30 {dimension_numbers = #tpu.dot_dimension_numbers<[1], [0], [0], [1], [0, 0, 1, 1], [], []>} : vector<32x32xf32>, vector<32x32xf32>, vector<32x32xf32> -> vector<32x32xf32>
    %85 = arith.addf %83, %84 : vector<32x32xf32>
    %86 = vector.broadcast %54 : vector<32x1xf32> to vector<32x32xf32>
    %87 = vector.broadcast %79 : vector<1x32xf32> to vector<32x32xf32>
    %88 = arith.mulf %86, %87 : vector<32x32xf32>
    %89 = arith.addf %85, %88 : vector<32x32xf32>
    %90 = vector.broadcast %56 : vector<32x1xf32> to vector<32x32xf32>
    %91 = vector.broadcast %80 : vector<1x32xf32> to vector<32x32xf32>
    %92 = arith.mulf %90, %91 : vector<32x32xf32>
    %93 = arith.addf %89, %92 : vector<32x32xf32>
    %cst_31 = arith.constant 0.000000e+00 : f32
    %94 = vector.broadcast %cst_31 : f32 to vector<32x32xf32>
    %95 = arith.maximumf %93, %94 : vector<32x32xf32>
    %96 = arith.addf %76, %95 : vector<32x32xf32>
    %c128 = arith.constant 128 : index
    %c0_32 = arith.constant 0 : index
    %97 = vector.load %arg2[%c128, %c0_32] : memref<208x32xf32, #tpu.memory_space<vmem>>, vector<32x32xf32>
    %c160 = arith.constant 160 : index
    %c0_33 = arith.constant 0 : index
    %98 = vector.load %arg2[%c160, %c0_33] : memref<208x32xf32, #tpu.memory_space<vmem>>, vector<32x32xf32>
    %99 = vector.extract_strided_slice %7 {offsets = [8, 0], sizes = [1, 32], strides = [1, 1]} : vector<16x32xf32> to vector<1x32xf32>
    %100 = vector.extract_strided_slice %7 {offsets = [9, 0], sizes = [1, 32], strides = [1, 1]} : vector<16x32xf32> to vector<1x32xf32>
    %cst_34 = arith.constant dense<0.000000e+00> : vector<32x32xf32>
    %101 = tpu.matmul %4, %95, %cst_34 {dimension_numbers = #tpu.dot_dimension_numbers<[1], [0], [0], [1], [0, 0, 1, 1], [], []>} : vector<32x32xf32>, vector<32x32xf32>, vector<32x32xf32> -> vector<32x32xf32>
    %cst_35 = arith.constant dense<0.000000e+00> : vector<32x32xf32>
    %102 = tpu.matmul %5, %95, %cst_35 {dimension_numbers = #tpu.dot_dimension_numbers<[1], [0], [0], [1], [0, 0, 1, 1], [], []>} : vector<32x32xf32>, vector<32x32xf32>, vector<32x32xf32> -> vector<32x32xf32>
    %cst_36 = arith.constant dense<0.000000e+00> : vector<32x32xf32>
    %103 = tpu.matmul %101, %97, %cst_36 {dimension_numbers = #tpu.dot_dimension_numbers<[1], [0], [0], [1], [0, 0, 1, 1], [], []>} : vector<32x32xf32>, vector<32x32xf32>, vector<32x32xf32> -> vector<32x32xf32>
    %cst_37 = arith.constant dense<0.000000e+00> : vector<32x32xf32>
    %104 = tpu.matmul %102, %98, %cst_37 {dimension_numbers = #tpu.dot_dimension_numbers<[1], [0], [0], [1], [0, 0, 1, 1], [], []>} : vector<32x32xf32>, vector<32x32xf32>, vector<32x32xf32> -> vector<32x32xf32>
    %105 = arith.addf %103, %104 : vector<32x32xf32>
    %106 = vector.broadcast %54 : vector<32x1xf32> to vector<32x32xf32>
    %107 = vector.broadcast %99 : vector<1x32xf32> to vector<32x32xf32>
    %108 = arith.mulf %106, %107 : vector<32x32xf32>
    %109 = arith.addf %105, %108 : vector<32x32xf32>
    %110 = vector.broadcast %56 : vector<32x1xf32> to vector<32x32xf32>
    %111 = vector.broadcast %100 : vector<1x32xf32> to vector<32x32xf32>
    %112 = arith.mulf %110, %111 : vector<32x32xf32>
    %113 = arith.addf %109, %112 : vector<32x32xf32>
    %cst_38 = arith.constant 0.000000e+00 : f32
    %114 = vector.broadcast %cst_38 : f32 to vector<32x32xf32>
    %115 = arith.maximumf %113, %114 : vector<32x32xf32>
    %116 = arith.addf %96, %115 : vector<32x32xf32>
    %cst_39 = arith.constant 2.500000e-01 : f32
    %117 = vector.broadcast %cst_39 : f32 to vector<32x32xf32>
    %118 = arith.mulf %116, %117 : vector<32x32xf32>
    %119 = vector.extract_strided_slice %7 {offsets = [10, 0], sizes = [1, 32], strides = [1, 1]} : vector<16x32xf32> to vector<1x32xf32>
    %120 = vector.broadcast %119 : vector<1x32xf32> to vector<32x32xf32>
    %121 = arith.mulf %120, %52 : vector<32x32xf32>
    %cst_40 = arith.constant 1.000000e+00 : f32
    %122 = vector.broadcast %cst_40 : f32 to vector<1x32xf32>
    %123 = arith.subf %122, %119 : vector<1x32xf32>
    %124 = vector.broadcast %123 : vector<1x32xf32> to vector<32x32xf32>
    %125 = arith.mulf %124, %118 : vector<32x32xf32>
    %126 = arith.addf %121, %125 : vector<32x32xf32>
    %127 = vector.shape_cast %126 : vector<32x32xf32> to vector<2x16x32xf32>
    %128 = vector.extract_strided_slice %127 {offsets = [0, 0, 0], sizes = [2, 8, 32], strides = [1, 1, 1]} : vector<2x16x32xf32> to vector<2x8x32xf32>
    %c0_41 = arith.constant 0 : index
    %c0_42 = arith.constant 0 : index
    %c0_43 = arith.constant 0 : index
    %129 = vector.load %arg3[%c0_41, %c0_42, %c0_43] : memref<2x8x32xf32, #tpu.memory_space<vmem>>, vector<2x8x32xf32>
    tpu.vector_store %arg3[%c0_41, %c0_42, %c0_43], %128 {strides = array<i32>} : memref<2x8x32xf32, #tpu.memory_space<vmem>>, vector<2x8x32xf32>,
    return
  }
  func.func @transform_0(%arg0: i32) -> (i32, i32, i32) {
    %c0_i32 = arith.constant 0 : i32
    %c0_i32_0 = arith.constant 0 : i32
    %c0_i32_1 = arith.constant 0 : i32
    return %arg0, %c0_i32, %c0_i32_0 : i32, i32, i32
  }
  func.func @transform_1(%arg0: i32) -> (i32, i32) {
    %c0_i32 = arith.constant 0 : i32
    %c0_i32_0 = arith.constant 0 : i32
    %c0_i32_1 = arith.constant 0 : i32
    return %c0_i32, %c0_i32_0 : i32, i32
  }
  func.func @transform_2(%arg0: i32) -> (i32, i32, i32) {
    %c0_i32 = arith.constant 0 : i32
    %c0_i32_0 = arith.constant 0 : i32
    %c0_i32_1 = arith.constant 0 : i32
    return %arg0, %c0_i32, %c0_i32_0 : i32, i32, i32
  }
}

</mosaic_0001>

<llo_original>
// kernel: tpu_custom_call.1
$region0: #{tpu_custom_call.1}
  #allocation0 [shape = 'u32[]', space=smem, size = 0x4, offset = 0x4, fixed_abs, tag = 'smem constant byte address 0x4 - core index']
  #allocation1 [shape = 'u32[72,128]{1,0:T(1,128)}', space=vmem, size = 0x9000, scoped, tag = 'internal scratch']
  %s0 = inlined_call_operand.vmem [shape: f32[1,32,256], index: 0, kind: input, shape index: {}]
  %s1 = inlined_call_operand.vmem [shape: f32[208,32], index: 1, kind: input, shape index: {}]
  %s2 = inlined_call_operand.hbm [shape: f32[2,8,32], index: 2, kind: output, shape index: {}]
  %s3 = sld [smem:[#allocation0]]
  $region18: #{tpu_custom_call.1} parent=0
    _
  %s5 = ssub.s32 1, %s3
  %s6 = scalar_select 0, %s5, %s3
  $region1: #{tpu_custom_call.1} parent=0
    #allocation2 [shape = 'u8[8192]{0}', space=vmem, size = 0x2000, scoped, tag = 'output window, operand 0, single buffered']
    #allocation3 [shape = 's32[1]{0}', space=sflag, size = 0x4, scoped, tag = 'scoped memory for tpu_custom_call.1']
    %7 = vsyncpa [#allocation3], 0
    // Predicated region
    $region2: #{tpu_custom_call.1} parent=1 // pred_check
      _
    $region3: #{tpu_custom_call.1} parent=1 // pred_check_branch
      %9 = sbr.rel (0) target = $region5
    $region4: #{tpu_custom_call.1} parent=1 // pred_region
      _
    $region5: #{tpu_custom_call.1} parent=1 // pred_fallthru
      _
    // Predicated region
    $region6: #{tpu_custom_call.1} parent=1 // pred_check
      _
    $region7: #{tpu_custom_call.1} parent=1 // pred_check_branch
      %11 = sbr.rel (0) target = $region9
    $region8: #{tpu_custom_call.1} parent=1 // pred_region
      _
    $region9: #{tpu_custom_call.1} parent=1 // pred_fallthru
      _
    %v12 = vld [vmem:[%s0] sm:$0xff]
    %v13 = vld [vmem:[%s0 + $0x8] sm:$0xff]
    %v14 = vld [vmem:[%s0 + $0x10] sm:$0xff]
    %v15 = vld [vmem:[%s0 + $0x18] sm:$0xff]
    %v16 = vld [vmem:[%s0 + $0x20] sm:$0xff]
    %v17 = vld [vmem:[%s0 + $0x28] sm:$0xff]
    %v18 = vld [vmem:[%s0 + $0x30] sm:$0xff]
    %v19 = vld [vmem:[%s0 + $0x38] sm:$0xff]
    %v20 = vld [vmem:[%s1 + $0xc0] sm:$0xff]
    %v21 = vld [vmem:[%s1 + $0xc8] sm:$0xff]
    %v23 = vrot.slane %v20, 1
    %v24 = vrot.slane %v20, 2
    %v25 = vrot.slane %v20, 3
    %v26 = vperm.slane %v20, 0
    %v27 = vperm.slane %v23, 0
    %v28 = vperm.slane %v24, 0
    %v29 = vperm.slane %v25, 0
    %38 = vrot.lane.b32.xlu0 %v12, 96
    %v39 = vpop.permute.xlu0 %38
    %40 = vrot.lane.b32.xlu0 %v14, 96
    %v41 = vpop.permute.xlu0 %40
    %42 = vrot.lane.b32.xlu0 %v16, 96
    %v43 = vpop.permute.xlu0 %42
    %44 = vrot.lane.b32.xlu0 %v18, 96
    %v45 = vpop.permute.xlu0 %44
    %v50 = vmul.f32 %v26, %v39
    %v51 = vmul.f32 %v26, %v41
    %v52 = vmul.f32 %v26, %v43
    %v53 = vmul.f32 %v26, %v45
    %v54 = vmul.f32 %v27, %v39
    %v55 = vmul.f32 %v27, %v41
    %v56 = vmul.f32 %v27, %v43
    %v57 = vmul.f32 %v27, %v45
    %v58 = vmul.f32 %v28, %v39
    %v59 = vmul.f32 %v28, %v41
    %v60 = vmul.f32 %v28, %v43
    %v61 = vmul.f32 %v28, %v45
    %v62 = vmul.f32 %v29, %v39
    %v63 = vmul.f32 %v29, %v41
    %v64 = vmul.f32 %v29, %v43
    %v65 = vmul.f32 %v29, %v45
    %vm66 = vcmask 261120
    %v68 = vsel %vm66, %v50, 0
    %v71 = vsel %vm66, %v51, 0
    %v74 = vsel %vm66, %v52, 0
    %v77 = vsel %vm66, %v53, 0
    %v80 = vsel %vm66, %v54, 0
    %v83 = vsel %vm66, %v55, 0
    %v86 = vsel %vm66, %v56, 0
    %v89 = vsel %vm66, %v57, 0
    %v92 = vsel %vm66, %v58, 0
    %v95 = vsel %vm66, %v59, 0
    %v98 = vsel %vm66, %v60, 0
    %v101 = vsel %vm66, %v61, 0
    %v104 = vsel %vm66, %v62, 0
    %v107 = vsel %vm66, %v63, 0
    %v110 = vsel %vm66, %v64, 0
    %v113 = vsel %vm66, %v65, 0
    %v115 = vsel %vm66, %v39, 0
    %v117 = vsel %vm66, %v41, 0
    %v119 = vsel %vm66, %v43, 0
    %v121 = vsel %vm66, %v45, 0
    %123 = vmatpush.xpose.msra.mxu0 0.0
    %124 = vmatpush.xpose.msra.mxu0 0.0
    %125 = vmatpush.xpose.msra.mxu0 0.0
    %126 = vmatpush.xpose.msra.mxu0 0.0
    %127 = vmatpush.xpose.msra.mxu0 0.0
    %128 = vmatpush.xpose.msra.mxu0 0.0
    %129 = vmatpush.xpose.msra.mxu0 0.0
    %130 = vmatpush.xpose.msra.mxu0 0.0
    %131 = vmatpush.xpose.msra.mxu0 0.0
    %132 = vmatpush.xpose.msra.mxu0 0.0
    %133 = vmatpush.xpose.msra.mxu0 0.0
    %134 = vmatpush.xpose.msra.mxu0 0.0
    %135 = vmatpush.xpose.msra.mxu0 %v121
    %136 = vmatpush.xpose.msra.mxu0 %v119
    %137 = vmatpush.xpose.msra.mxu0 %v117
    %138 = vmatpush.xpose.msra.mxu0 %v115
    %139 = vmatmul.f32.gmra.mxu0 %v68
    %v140 = vpop.f32.mrf.mxu0
    %v141 = vadd.f32 0.0, %v140
    %142 = vmatmul.f32.gmra.mxu0 %v71
    %v143 = vpop.f32.mrf.mxu0
    %v144 = vadd.f32 0.0, %v143
    %145 = vmatmul.f32.gmra.mxu0 %v74
    %v146 = vpop.f32.mrf.mxu0
    %v147 = vadd.f32 0.0, %v146
    %148 = vmatmul.f32.gmra.mxu0 %v77
    %v149 = vpop.f32.mrf.mxu0
    %v150 = vadd.f32 0.0, %v149
    %151 = vmatmul.f32.gmra.mxu0 %v80
    %v152 = vpop.f32.mrf.mxu0
    %v153 = vadd.f32 0.0, %v152
    %154 = vmatmul.f32.gmra.mxu0 %v83
    %v155 = vpop.f32.mrf.mxu0
    %v156 = vadd.f32 0.0, %v155
    %157 = vmatmul.f32.gmra.mxu0 %v86
    %v158 = vpop.f32.mrf.mxu0
    %v159 = vadd.f32 0.0, %v158
    %160 = vmatmul.f32.gmra.mxu0 %v89
    %v161 = vpop.f32.mrf.mxu0
    %v162 = vadd.f32 0.0, %v161
    %163 = vmatmul.f32.gmra.mxu0 %v92
    %v164 = vpop.f32.mrf.mxu0
    %v165 = vadd.f32 0.0, %v164
    %166 = vmatmul.f32.gmra.mxu0 %v95
    %v167 = vpop.f32.mrf.mxu0
    %v168 = vadd.f32 0.0, %v167
    %169 = vmatmul.f32.gmra.mxu0 %v98
    %v170 = vpop.f32.mrf.mxu0
    %v171 = vadd.f32 0.0, %v170
    %172 = vmatmul.f32.gmra.mxu0 %v101
    %v173 = vpop.f32.mrf.mxu0
    %v174 = vadd.f32 0.0, %v173
    %175 = vmatmul.f32.gmra.mxu0 %v104
    %v176 = vpop.f32.mrf.mxu0
    %v177 = vadd.f32 0.0, %v176
    %178 = vmatmul.f32.gmra.mxu0 %v107
    %v179 = vpop.f32.mrf.mxu0
    %v180 = vadd.f32 0.0, %v179
    %181 = vmatmul.f32.gmra.mxu0 %v110
    %v182 = vpop.f32.mrf.mxu0
    %v183 = vadd.f32 0.0, %v182
    %184 = vmatmul.f32.gmra.mxu0 %v113
    %v185 = vpop.f32.mrf.mxu0
    %v186 = vadd.f32 0.0, %v185
    %187 = vdwg.mxu0
    %vm188 = vcmp.gt.f32.partialorder %v141, 0.0
    %vm189 = vcmp.gt.f32.partialorder %v144, 0.0
    %vm190 = vcmp.gt.f32.partialorder %v147, 0.0
    %vm191 = vcmp.gt.f32.partialorder %v150, 0.0
    %vm192 = vcmp.gt.f32.partialorder %v153, 0.0
    %vm193 = vcmp.gt.f32.partialorder %v156, 0.0
    %vm194 = vcmp.gt.f32.partialorder %v159, 0.0
    %vm195 = vcmp.gt.f32.partialorder %v162, 0.0
    %vm196 = vcmp.gt.f32.partialorder %v165, 0.0
    %vm197 = vcmp.gt.f32.partialorder %v168, 0.0
    %vm198 = vcmp.gt.f32.partialorder %v171, 0.0
    %vm199 = vcmp.gt.f32.partialorder %v174, 0.0
    %vm200 = vcmp.gt.f32.partialorder %v177, 0.0
    %vm201 = vcmp.gt.f32.partialorder %v180, 0.0
    %vm202 = vcmp.gt.f32.partialorder %v183, 0.0
    %vm203 = vcmp.gt.f32.partialorder %v186, 0.0
    %v204 = vmul.f32 %v141, 0.2
    %v205 = vmul.f32 %v144, 0.2
    %v206 = vmul.f32 %v147, 0.2
    %v207 = vmul.f32 %v150, 0.2
    %v208 = vmul.f32 %v153, 0.2
    %v209 = vmul.f32 %v156, 0.2
    %v210 = vmul.f32 %v159, 0.2
    %v211 = vmul.f32 %v162, 0.2
    %v212 = vmul.f32 %v165, 0.2
    %v213 = vmul.f32 %v168, 0.2
    %v214 = vmul.f32 %v171, 0.2
    %v215 = vmul.f32 %v174, 0.2
    %v216 = vmul.f32 %v177, 0.2
    %v217 = vmul.f32 %v180, 0.2
    %v218 = vmul.f32 %v183, 0.2
    %v219 = vmul.f32 %v186, 0.2
    %v220 = vsel %vm188, %v141, %v204
    %v221 = vsel %vm189, %v144, %v205
    %v222 = vsel %vm190, %v147, %v206
    %v223 = vsel %vm191, %v150, %v207
    %v224 = vsel %vm192, %v153, %v208
    %v225 = vsel %vm193, %v156, %v209
    %v226 = vsel %vm194, %v159, %v210
    %v227 = vsel %vm195, %v162, %v211
    %v228 = vsel %vm196, %v165, %v212
    %v229 = vsel %vm197, %v168, %v213
    %v230 = vsel %vm198, %v171, %v214
    %v231 = vsel %vm199, %v174, %v215
    %v232 = vsel %vm200, %v177, %v216
    %v233 = vsel %vm201, %v180, %v217
    %v234 = vsel %vm202, %v183, %v218
    %v235 = vsel %vm203, %v186, %v219
    %vm236 = vcmp.lt.f32.partialorder %v13, 0.0
    %vm237 = vcmp.lt.f32.partialorder %v15, 0.0
    %vm238 = vcmp.lt.f32.partialorder %v17, 0.0
    %vm239 = vcmp.lt.f32.partialorder %v19, 0.0
    %v240 = vsel %vm236, -1e+30, -9e+15
    %v241 = vsel %vm237, -1e+30, -9e+15
    %v242 = vsel %vm238, -1e+30, -9e+15
    %v243 = vsel %vm239, -1e+30, -9e+15
    %vm244 = vcmp.eq.f32.partialorder %v13, 1.0
    %vm245 = vcmp.eq.f32.partialorder %v15, 1.0
    %vm246 = vcmp.eq.f32.partialorder %v17, 1.0
    %vm247 = vcmp.eq.f32.partialorder %v19, 1.0
    %v248 = vsel %vm244, %v220, %v240
    %v249 = vsel %vm245, %v221, %v241
    %v250 = vsel %vm246, %v222, %v242
    %v251 = vsel %vm247, %v223, %v243
    %vm252 = vcmp.eq.f32.partialorder %v13, 2.0
    %vm253 = vcmp.eq.f32.partialorder %v15, 2.0
    %vm254 = vcmp.eq.f32.partialorder %v17, 2.0
    %vm255 = vcmp.eq.f32.partialorder %v19, 2.0
    %v256 = vsel %vm252, %v224, %v248
    %v257 = vsel %vm253, %v225, %v249
    %v258 = vsel %vm254, %v226, %v250
    %v259 = vsel %vm255, %v227, %v251
    %vm260 = vcmp.eq.f32.partialorder %v13, 3.0
    %vm261 = vcmp.eq.f32.partialorder %v15, 3.0
    %vm262 = vcmp.eq.f32.partialorder %v17, 3.0
    %vm263 = vcmp.eq.f32.partialorder %v19, 3.0
    %v264 = vsel %vm260, %v228, %v256
    %v265 = vsel %vm261, %v229, %v257
    %v266 = vsel %vm262, %v230, %v258
    %v267 = vsel %vm263, %v231, %v259
    %vm268 = vcmp.eq.f32.partialorder %v13, 4.0
    %vm269 = vcmp.eq.f32.partialorder %v15, 4.0
    %vm270 = vcmp.eq.f32.partialorder %v17, 4.0
    %vm271 = vcmp.eq.f32.partialorder %v19, 4.0
    %v272 = vsel %vm268, %v232, %v264
    %v273 = vsel %vm269, %v233, %v265
    %v274 = vsel %vm270, %v234, %v266
    %v275 = vsel %vm271, %v235, %v267
    %v276 = vsel %vm66, %v272, -inf
    %277 = vmax.xlane.f32.xlu0 %v276
    %v278 = vpop.xlane.xlu0 %277
    %v279 = vsel %vm66, %v273, -inf
    %280 = vmax.xlane.f32.xlu0 %v279
    %v281 = vpop.xlane.xlu0 %280
    %v282 = vsel %vm66, %v274, -inf
    %283 = vmax.xlane.f32.xlu0 %v282
    %v284 = vpop.xlane.xlu0 %283
    %v285 = vsel %vm66, %v275, -inf
    %286 = vmax.xlane.f32.xlu0 %v285
    %v287 = vpop.xlane.xlu0 %286
    %v288 = vsub.f32 %v272, %v278
    %v289 = vsub.f32 %v273, %v281
    %v290 = vsub.f32 %v274, %v284
    %v291 = vsub.f32 %v275, %v287
    %v292 = vmul.f32 %v288, 1.442695
    %v293 = vpow.pop %v292
    %v294 = vmul.f32 %v289, 1.442695
    %v295 = vpow.pop %v294
    %v296 = vmul.f32 %v290, 1.442695
    %v297 = vpow.pop %v296
    %v298 = vmul.f32 %v291, 1.442695
    %v299 = vpow.pop %v298
    %v300 = vsel %vm66, %v293, 0.0
    %301 = vadd.xlane.f32.xlu0 %v300
    %v302 = vpop.xlane.xlu0 %301
    %v303 = vsel %vm66, %v295, 0.0
    %304 = vadd.xlane.f32.xlu0 %v303
    %v305 = vpop.xlane.xlu0 %304
    %v306 = vsel %vm66, %v297, 0.0
    %307 = vadd.xlane.f32.xlu0 %v306
    %v308 = vpop.xlane.xlu0 %307
    %v309 = vsel %vm66, %v299, 0.0
    %310 = vadd.xlane.f32.xlu0 %v309
    %v311 = vpop.xlane.xlu0 %310
    %v312 = vrcp.pop %v302
    %v313 = vrcp.pop %v305
    %v314 = vrcp.pop %v308
    %v315 = vrcp.pop %v311
    %v316 = vmul.f32 %v293, %v312
    %v317 = vmul.f32 %v295, %v313
    %v318 = vmul.f32 %v297, %v314
    %v319 = vmul.f32 %v299, %v315
    %v321 = vsel %vm66, %v316, 0
    %v324 = vsel %vm66, %v317, 0
    %v327 = vsel %vm66, %v318, 0
    %v330 = vsel %vm66, %v319, 0
    %332 = vmatpush.msra.mxu0 0.0
    %333 = vmatpush.msra.mxu0 0.0
    %334 = vmatpush.msra.mxu0 0.0
    %335 = vmatpush.msra.mxu0 0.0
    %336 = vmatpush.msra.mxu0 0.0
    %337 = vmatpush.msra.mxu0 0.0
    %338 = vmatpush.msra.mxu0 0.0
    %339 = vmatpush.msra.mxu0 0.0
    %340 = vmatpush.msra.mxu0 0.0
    %341 = vmatpush.msra.mxu0 0.0
    %342 = vmatpush.msra.mxu0 0.0
    %343 = vmatpush.msra.mxu0 0.0
    %344 = vmatpush.msra.mxu0 %v45
    %345 = vmatpush.msra.mxu0 %v43
    %346 = vmatpush.msra.mxu0 %v41
    %347 = vmatpush.msra.mxu0 %v39
    %348 = vmatmul.f32.gmra.mxu0 %v321
    %v349 = vpop.f32.mrf.mxu0
    %v350 = vadd.f32 0.0, %v349
    %351 = vmatmul.f32.gmra.mxu0 %v324
    %v352 = vpop.f32.mrf.mxu0
    %353 = vmatmul.f32.gmra.mxu0 %v327
    %v354 = vpop.f32.mrf.mxu0
    %v355 = vadd.f32 0.0, %v354
    %356 = vmatmul.f32.gmra.mxu0 %v330
    %v357 = vpop.f32.mrf.mxu0
    %358 = vdwg.mxu0
    %359 = vrot.lane.b32.xlu0 %v12, 64
    %v360 = vpop.permute.xlu0 %359
    %361 = vrot.lane.b32.xlu0 %v14, 64
    %v362 = vpop.permute.xlu0 %361
    %363 = vrot.lane.b32.xlu0 %v16, 64
    %v364 = vpop.permute.xlu0 %363
    %365 = vrot.lane.b32.xlu0 %v18, 64
    %v366 = vpop.permute.xlu0 %365
    %v371 = vsel %vm66, %v360, 0.0
    %372 = vadd.xlane.f32.xlu0 %v371
    %v373 = vpop.xlane.xlu0 %372
    %v374 = vsel %vm66, %v362, 0.0
    %375 = vadd.xlane.f32.xlu0 %v374
    %v376 = vpop.xlane.xlu0 %375
    %v377 = vsel %vm66, %v364, 0.0
    %378 = vadd.xlane.f32.xlu0 %v377
    %v379 = vpop.xlane.xlu0 %378
    %v380 = vsel %vm66, %v366, 0.0
    %381 = vadd.xlane.f32.xlu0 %v380
    %v382 = vpop.xlane.xlu0 %381
    %383 = vrot.lane.b32.xlu0 %v12, 32
    %v384 = vpop.permute.xlu0 %383
    %385 = vrot.lane.b32.xlu0 %v14, 32
    %v386 = vpop.permute.xlu0 %385
    %387 = vrot.lane.b32.xlu0 %v16, 32
    %v388 = vpop.permute.xlu0 %387
    %389 = vrot.lane.b32.xlu0 %v18, 32
    %v390 = vpop.permute.xlu0 %389
    %v395 = vsel %vm66, %v384, 0.0
    %396 = vadd.xlane.f32.xlu0 %v395
    %v397 = vpop.xlane.xlu0 %396
    %v398 = vsel %vm66, %v386, 0.0
    %399 = vadd.xlane.f32.xlu0 %v398
    %v400 = vpop.xlane.xlu0 %399
    %v401 = vsel %vm66, %v388, 0.0
    %402 = vadd.xlane.f32.xlu0 %v401
    %v403 = vpop.xlane.xlu0 %402
    %v404 = vsel %vm66, %v390, 0.0
    %405 = vadd.xlane.f32.xlu0 %v404
    %v406 = vpop.xlane.xlu0 %405
    %v407 = vld [vmem:[%s1] sm:$0xff]
    %v408 = vld [vmem:[%s1 + $0x8] sm:$0xff]
    %v409 = vld [vmem:[%s1 + $0x10] sm:$0xff]
    %v410 = vld [vmem:[%s1 + $0x18] sm:$0xff]
    %v411 = vld [vmem:[%s1 + $0x20] sm:$0xff]
    %v412 = vld [vmem:[%s1 + $0x28] sm:$0xff]
    %v413 = vld [vmem:[%s1 + $0x30] sm:$0xff]
    %v414 = vld [vmem:[%s1 + $0x38] sm:$0xff]
    %v415 = vsel %vm66, %v360, 0
    %v417 = vsel %vm66, %v362, 0
    %v419 = vsel %vm66, %v364, 0
    %v421 = vsel %vm66, %v366, 0
    %423 = vmatpush.msra.mxu0 0.0
    %424 = vmatpush.msra.mxu0 0.0
    %425 = vmatpush.msra.mxu0 0.0
    %426 = vmatpush.msra.mxu0 0.0
    %427 = vmatpush.msra.mxu0 0.0
    %428 = vmatpush.msra.mxu0 0.0
    %429 = vmatpush.msra.mxu0 0.0
    %430 = vmatpush.msra.mxu0 0.0
    %431 = vmatpush.msra.mxu0 0.0
    %432 = vmatpush.msra.mxu0 0.0
    %433 = vmatpush.msra.mxu0 0.0
    %434 = vmatpush.msra.mxu0 0.0
    %435 = vmatpush.msra.mxu0 %v18
    %436 = vmatpush.msra.mxu0 %v16
    %437 = vmatpush.msra.mxu0 %v14
    %438 = vmatpush.msra.mxu0 %v12
    %439 = vmatmul.f32.gmra.mxu0 %v415
    %v440 = vpop.f32.mrf.mxu0
    %v441 = vadd.f32 0.0, %v440
    %442 = vmatmul.f32.gmra.mxu0 %v417
    %v443 = vpop.f32.mrf.mxu0
    %v444 = vadd.f32 0.0, %v443
    %445 = vmatmul.f32.gmra.mxu0 %v419
    %v446 = vpop.f32.mrf.mxu0
    %v447 = vadd.f32 0.0, %v446
    %448 = vmatmul.f32.gmra.mxu0 %v421
    %v449 = vpop.f32.mrf.mxu0
    %v450 = vadd.f32 0.0, %v449
    %451 = vdwg.mxu0
    %v452 = vsel %vm66, %v384, 0
    %v454 = vsel %vm66, %v386, 0
    %v456 = vsel %vm66, %v388, 0
    %v458 = vsel %vm66, %v390, 0
    %460 = vmatpush.msra.mxu0 0.0
    %461 = vmatpush.msra.mxu0 0.0
    %462 = vmatpush.msra.mxu0 0.0
    %463 = vmatpush.msra.mxu0 0.0
    %464 = vmatpush.msra.mxu0 0.0
    %465 = vmatpush.msra.mxu0 0.0
    %466 = vmatpush.msra.mxu0 0.0
    %467 = vmatpush.msra.mxu0 0.0
    %468 = vmatpush.msra.mxu0 0.0
    %469 = vmatpush.msra.mxu0 0.0
    %470 = vmatpush.msra.mxu0 0.0
    %471 = vmatpush.msra.mxu0 0.0
    %472 = vmatpush.msra.mxu0 %v18
    %473 = vmatpush.msra.mxu0 %v16
    %474 = vmatpush.msra.mxu0 %v14
    %475 = vmatpush.msra.mxu0 %v12
    %476 = vmatmul.f32.gmra.mxu0 %v452
    %v477 = vpop.f32.mrf.mxu0
    %v478 = vadd.f32 0.0, %v477
    %479 = vmatmul.f32.gmra.mxu0 %v454
    %v480 = vpop.f32.mrf.mxu0
    %v481 = vadd.f32 0.0, %v480
    %482 = vmatmul.f32.gmra.mxu0 %v456
    %v483 = vpop.f32.mrf.mxu0
    %v484 = vadd.f32 0.0, %v483
    %485 = vmatmul.f32.gmra.mxu0 %v458
    %v486 = vpop.f32.mrf.mxu0
    %v487 = vadd.f32 0.0, %v486
    %488 = vdwg.mxu0
    %v490 = vsel %vm66, %v478, 0
    %v493 = vsel %vm66, %v481, 0
    %v496 = vsel %vm66, %v484, 0
    %v499 = vsel %vm66, %v487, 0
    %501 = vmatpush.msra.mxu0 0.0
    %502 = vmatpush.msra.mxu0 0.0
    %503 = vmatpush.msra.mxu0 0.0
    %504 = vmatpush.msra.mxu0 0.0
    %505 = vmatpush.msra.mxu0 0.0
    %506 = vmatpush.msra.mxu0 0.0
    %507 = vmatpush.msra.mxu0 0.0
    %508 = vmatpush.msra.mxu0 0.0
    %509 = vmatpush.msra.mxu0 0.0
    %510 = vmatpush.msra.mxu0 0.0
    %511 = vmatpush.msra.mxu0 0.0
    %512 = vmatpush.msra.mxu0 0.0
    %513 = vmatpush.msra.mxu0 %v414
    %514 = vmatpush.msra.mxu0 %v413
    %515 = vmatpush.msra.mxu0 %v412
    %516 = vmatpush.msra.mxu0 %v411
    %517 = vmatmul.f32.gmra.mxu0 %v490
    %v518 = vpop.f32.mrf.mxu0
    %v519 = vadd.f32 0.0, %v518
    %520 = vmatmul.f32.gmra.mxu0 %v493
    %v521 = vpop.f32.mrf.mxu0
    %v522 = vadd.f32 0.0, %v521
    %523 = vmatmul.f32.gmra.mxu0 %v496
    %v524 = vpop.f32.mrf.mxu0
    %v525 = vadd.f32 0.0, %v524
    %526 = vmatmul.f32.gmra.mxu0 %v499
    %v527 = vpop.f32.mrf.mxu0
    %v528 = vadd.f32 0.0, %v527
    %529 = vdwg.mxu0
    %v531 = vsel %vm66, %v441, 0
    %v534 = vsel %vm66, %v444, 0
    %v537 = vsel %vm66, %v447, 0
    %v540 = vsel %vm66, %v450, 0
    %542 = vmatpush.msra.mxu0 0.0
    %543 = vmatpush.msra.mxu0 0.0
    %544 = vmatpush.msra.mxu0 0.0
    %545 = vmatpush.msra.mxu0 0.0
    %546 = vmatpush.msra.mxu0 0.0
    %547 = vmatpush.msra.mxu0 0.0
    %548 = vmatpush.msra.mxu0 0.0
    %549 = vmatpush.msra.mxu0 0.0
    %550 = vmatpush.msra.mxu0 0.0
    %551 = vmatpush.msra.mxu0 0.0
    %552 = vmatpush.msra.mxu0 0.0
    %553 = vmatpush.msra.mxu0 0.0
    %554 = vmatpush.msra.mxu0 %v410
    %555 = vmatpush.msra.mxu0 %v409
    %556 = vmatpush.msra.mxu0 %v408
    %557 = vmatpush.msra.mxu0 %v407
    %558 = vmatmul.f32.gmra.mxu0 %v531
    %v559 = vpop.f32.mrf.mxu0
    %v560 = vadd.f32 %v519, %v559
    %561 = vmatmul.f32.gmra.mxu0 %v534
    %v562 = vpop.f32.mrf.mxu0
    %v563 = vadd.f32 %v522, %v562
    %564 = vmatmul.f32.gmra.mxu0 %v537
    %v565 = vpop.f32.mrf.mxu0
    %v566 = vadd.f32 %v525, %v565
    %567 = vmatmul.f32.gmra.mxu0 %v540
    %v568 = vpop.f32.mrf.mxu0
    %v569 = vadd.f32 %v528, %v568
    %570 = vdwg.mxu0
    %v571 = vperm.slane %v20, 4
    %v572 = vmul.f32 %v373, %v571
    %v573 = vmul.f32 %v376, %v571
    %v574 = vmul.f32 %v379, %v571
    %v575 = vmul.f32 %v382, %v571
    %v576 = vadd.f32 %v560, %v572
    %v577 = vadd.f32 %v563, %v573
    %v578 = vadd.f32 %v566, %v574
    %v579 = vadd.f32 %v569, %v575
    %v580 = vperm.slane %v20, 5
    %v581 = vmul.f32 %v397, %v580
    %v582 = vmul.f32 %v400, %v580
    %v583 = vmul.f32 %v403, %v580
    %v584 = vmul.f32 %v406, %v580
    %v585 = vadd.f32 %v576, %v581
    %v586 = vadd.f32 %v577, %v582
    %v587 = vadd.f32 %v578, %v583
    %v588 = vadd.f32 %v579, %v584
    %v589 = vmax.f32 %v585, 0.0
    %v590 = vmax.f32 %v586, 0.0
    %v591 = vmax.f32 %v587, 0.0
    %v592 = vmax.f32 %v588, 0.0
    %v593 = vadd.f32 %v12, %v589
    %v594 = vadd.f32 %v16, %v591
    %v595 = vld [vmem:[%s1 + $0x40] sm:$0xff]
    %v596 = vld [vmem:[%s1 + $0x48] sm:$0xff]
    %v597 = vld [vmem:[%s1 + $0x50] sm:$0xff]
    %v598 = vld [vmem:[%s1 + $0x58] sm:$0xff]
    %v599 = vld [vmem:[%s1 + $0x60] sm:$0xff]
    %v600 = vld [vmem:[%s1 + $0x68] sm:$0xff]
    %v601 = vld [vmem:[%s1 + $0x70] sm:$0xff]
    %v602 = vld [vmem:[%s1 + $0x78] sm:$0xff]
    %603 = vmatpush.msra.mxu0 0.0
    %604 = vmatpush.msra.mxu0 0.0
    %605 = vmatpush.msra.mxu0 0.0
    %606 = vmatpush.msra.mxu0 0.0
    %607 = vmatpush.msra.mxu0 0.0
    %608 = vmatpush.msra.mxu0 0.0
    %609 = vmatpush.msra.mxu0 0.0
    %610 = vmatpush.msra.mxu0 0.0
    %611 = vmatpush.msra.mxu0 0.0
    %612 = vmatpush.msra.mxu0 0.0
    %613 = vmatpush.msra.mxu0 0.0
    %614 = vmatpush.msra.mxu0 0.0
    %615 = vmatpush.msra.mxu0 %v592
    %616 = vmatpush.msra.mxu0 %v591
    %617 = vmatpush.msra.mxu0 %v590
    %618 = vmatpush.msra.mxu0 %v589
    %619 = vmatmul.f32.gmra.mxu0 %v415
    %v620 = vpop.f32.mrf.mxu0
    %v621 = vadd.f32 0.0, %v620
    %622 = vmatmul.f32.gmra.mxu0 %v417
    %v623 = vpop.f32.mrf.mxu0
    %v624 = vadd.f32 0.0, %v623
    %625 = vmatmul.f32.gmra.mxu0 %v419
    %v626 = vpop.f32.mrf.mxu0
    %v627 = vadd.f32 0.0, %v626
    %628 = vmatmul.f32.gmra.mxu0 %v421
    %v629 = vpop.f32.mrf.mxu0
    %v630 = vadd.f32 0.0, %v629
    %631 = vdwg.mxu0
    %632 = vmatpush.msra.mxu0 0.0
    %633 = vmatpush.msra.mxu0 0.0
    %634 = vmatpush.msra.mxu0 0.0
    %635 = vmatpush.msra.mxu0 0.0
    %636 = vmatpush.msra.mxu0 0.0
    %637 = vmatpush.msra.mxu0 0.0
    %638 = vmatpush.msra.mxu0 0.0
    %639 = vmatpush.msra.mxu0 0.0
    %640 = vmatpush.msra.mxu0 0.0
    %641 = vmatpush.msra.mxu0 0.0
    %642 = vmatpush.msra.mxu0 0.0
    %643 = vmatpush.msra.mxu0 0.0
    %644 = vmatpush.msra.mxu0 %v592
    %645 = vmatpush.msra.mxu0 %v591
    %646 = vmatpush.msra.mxu0 %v590
    %647 = vmatpush.msra.mxu0 %v589
    %648 = vmatmul.f32.gmra.mxu0 %v452
    %v649 = vpop.f32.mrf.mxu0
    %v650 = vadd.f32 0.0, %v649
    %651 = vmatmul.f32.gmra.mxu0 %v454
    %v652 = vpop.f32.mrf.mxu0
    %v653 = vadd.f32 0.0, %v652
    %654 = vmatmul.f32.gmra.mxu0 %v456
    %v655 = vpop.f32.mrf.mxu0
    %v656 = vadd.f32 0.0, %v655
    %657 = vmatmul.f32.gmra.mxu0 %v458
    %v658 = vpop.f32.mrf.mxu0
    %v659 = vadd.f32 0.0, %v658
    %660 = vdwg.mxu0
    %v662 = vsel %vm66, %v650, 0
    %v665 = vsel %vm66, %v653, 0
    %v668 = vsel %vm66, %v656, 0
    %v671 = vsel %vm66, %v659, 0
    %673 = vmatpush.msra.mxu0 0.0
    %674 = vmatpush.msra.mxu0 0.0
    %675 = vmatpush.msra.mxu0 0.0
    %676 = vmatpush.msra.mxu0 0.0
    %677 = vmatpush.msra.mxu0 0.0
    %678 = vmatpush.msra.mxu0 0.0
    %679 = vmatpush.msra.mxu0 0.0
    %680 = vmatpush.msra.mxu0 0.0
    %681 = vmatpush.msra.mxu0 0.0
    %682 = vmatpush.msra.mxu0 0.0
    %683 = vmatpush.msra.mxu0 0.0
    %684 = vmatpush.msra.mxu0 0.0
    %685 = vmatpush.msra.mxu0 %v602
    %686 = vmatpush.msra.mxu0 %v601
    %687 = vmatpush.msra.mxu0 %v600
    %688 = vmatpush.msra.mxu0 %v599
    %689 = vmatmul.f32.gmra.mxu0 %v662
    %v690 = vpop.f32.mrf.mxu0
    %v691 = vadd.f32 0.0, %v690
    %692 = vmatmul.f32.gmra.mxu0 %v665
    %v693 = vpop.f32.mrf.mxu0
    %v694 = vadd.f32 0.0, %v693
    %695 = vmatmul.f32.gmra.mxu0 %v668
    %v696 = vpop.f32.mrf.mxu0
    %v697 = vadd.f32 0.0, %v696
    %698 = vmatmul.f32.gmra.mxu0 %v671
    %v699 = vpop.f32.mrf.mxu0
    %v700 = vadd.f32 0.0, %v699
    %701 = vdwg.mxu0
    %v703 = vsel %vm66, %v621, 0
    %v706 = vsel %vm66, %v624, 0
    %v709 = vsel %vm66, %v627, 0
    %v712 = vsel %vm66, %v630, 0
    %714 = vmatpush.msra.mxu0 0.0
    %715 = vmatpush.msra.mxu0 0.0
    %716 = vmatpush.msra.mxu0 0.0
    %717 = vmatpush.msra.mxu0 0.0
    %718 = vmatpush.msra.mxu0 0.0
    %719 = vmatpush.msra.mxu0 0.0
    %720 = vmatpush.msra.mxu0 0.0
    %721 = vmatpush.msra.mxu0 0.0
    %722 = vmatpush.msra.mxu0 0.0
    %723 = vmatpush.msra.mxu0 0.0
    %724 = vmatpush.msra.mxu0 0.0
    %725 = vmatpush.msra.mxu0 0.0
    %726 = vmatpush.msra.mxu0 %v598
    %727 = vmatpush.msra.mxu0 %v597
    %728 = vmatpush.msra.mxu0 %v596
    %729 = vmatpush.msra.mxu0 %v595
    %730 = vmatmul.f32.gmra.mxu0 %v703
    %v731 = vpop.f32.mrf.mxu0
    %v732 = vadd.f32 %v691, %v731
    %733 = vmatmul.f32.gmra.mxu0 %v706
    %v734 = vpop.f32.mrf.mxu0
    %v735 = vadd.f32 %v694, %v734
    %736 = vmatmul.f32.gmra.mxu0 %v709
    %v737 = vpop.f32.mrf.mxu0
    %v738 = vadd.f32 %v697, %v737
    %739 = vmatmul.f32.gmra.mxu0 %v712
    %v740 = vpop.f32.mrf.mxu0
    %v741 = vadd.f32 %v700, %v740
    %742 = vdwg.mxu0
    %v743 = vperm.slane %v20, 6
    %v744 = vmul.f32 %v373, %v743
    %v745 = vmul.f32 %v376, %v743
    %v746 = vmul.f32 %v379, %v743
    %v747 = vmul.f32 %v382, %v743
    %v748 = vadd.f32 %v732, %v744
    %v749 = vadd.f32 %v735, %v745
    %v750 = vadd.f32 %v738, %v746
    %v751 = vadd.f32 %v741, %v747
    %v752 = vperm.slane %v20, 7
    %v753 = vmul.f32 %v397, %v752
    %v754 = vmul.f32 %v400, %v752
    %v755 = vmul.f32 %v403, %v752
    %v756 = vmul.f32 %v406, %v752
    %v757 = vadd.f32 %v748, %v753
    %v758 = vadd.f32 %v749, %v754
    %v759 = vadd.f32 %v750, %v755
    %v760 = vadd.f32 %v751, %v756
    %v761 = vmax.f32 %v757, 0.0
    %v762 = vmax.f32 %v758, 0.0
    %v763 = vmax.f32 %v759, 0.0
    %v764 = vmax.f32 %v760, 0.0
    %v765 = vadd.f32 %v593, %v761
    %v766 = vadd.f32 %v594, %v763
    %v767 = vld [vmem:[%s1 + $0x80] sm:$0xff]
    %v768 = vld [vmem:[%s1 + $0x88] sm:$0xff]
    %v769 = vld [vmem:[%s1 + $0x90] sm:$0xff]
    %v770 = vld [vmem:[%s1 + $0x98] sm:$0xff]
    %v771 = vld [vmem:[%s1 + $0xa0] sm:$0xff]
    %v772 = vld [vmem:[%s1 + $0xa8] sm:$0xff]
    %v773 = vld [vmem:[%s1 + $0xb0] sm:$0xff]
    %v774 = vld [vmem:[%s1 + $0xb8] sm:$0xff]
    %775 = vmatpush.msra.mxu0 0.0
    %776 = vmatpush.msra.mxu0 0.0
    %777 = vmatpush.msra.mxu0 0.0
    %778 = vmatpush.msra.mxu0 0.0
    %779 = vmatpush.msra.mxu0 0.0
    %780 = vmatpush.msra.mxu0 0.0
    %781 = vmatpush.msra.mxu0 0.0
    %782 = vmatpush.msra.mxu0 0.0
    %783 = vmatpush.msra.mxu0 0.0
    %784 = vmatpush.msra.mxu0 0.0
    %785 = vmatpush.msra.mxu0 0.0
    %786 = vmatpush.msra.mxu0 0.0
    %787 = vmatpush.msra.mxu0 %v764
    %788 = vmatpush.msra.mxu0 %v763
    %789 = vmatpush.msra.mxu0 %v762
    %790 = vmatpush.msra.mxu0 %v761
    %791 = vmatmul.f32.gmra.mxu0 %v415
    %v792 = vpop.f32.mrf.mxu0
    %v793 = vadd.f32 0.0, %v792
    %794 = vmatmul.f32.gmra.mxu0 %v417
    %v795 = vpop.f32.mrf.mxu0
    %v796 = vadd.f32 0.0, %v795
    %797 = vmatmul.f32.gmra.mxu0 %v419
    %v798 = vpop.f32.mrf.mxu0
    %v799 = vadd.f32 0.0, %v798
    %800 = vmatmul.f32.gmra.mxu0 %v421
    %v801 = vpop.f32.mrf.mxu0
    %v802 = vadd.f32 0.0, %v801
    %803 = vdwg.mxu0
    %804 = vmatpush.msra.mxu0 0.0
    %805 = vmatpush.msra.mxu0 0.0
    %806 = vmatpush.msra.mxu0 0.0
    %807 = vmatpush.msra.mxu0 0.0
    %808 = vmatpush.msra.mxu0 0.0
    %809 = vmatpush.msra.mxu0 0.0
    %810 = vmatpush.msra.mxu0 0.0
    %811 = vmatpush.msra.mxu0 0.0
    %812 = vmatpush.msra.mxu0 0.0
    %813 = vmatpush.msra.mxu0 0.0
    %814 = vmatpush.msra.mxu0 0.0
    %815 = vmatpush.msra.mxu0 0.0
    %816 = vmatpush.msra.mxu0 %v764
    %817 = vmatpush.msra.mxu0 %v763
    %818 = vmatpush.msra.mxu0 %v762
    %819 = vmatpush.msra.mxu0 %v761
    %820 = vmatmul.f32.gmra.mxu0 %v452
    %v821 = vpop.f32.mrf.mxu0
    %v822 = vadd.f32 0.0, %v821
    %823 = vmatmul.f32.gmra.mxu0 %v454
    %v824 = vpop.f32.mrf.mxu0
    %v825 = vadd.f32 0.0, %v824
    %826 = vmatmul.f32.gmra.mxu0 %v456
    %v827 = vpop.f32.mrf.mxu0
    %v828 = vadd.f32 0.0, %v827
    %829 = vmatmul.f32.gmra.mxu0 %v458
    %v830 = vpop.f32.mrf.mxu0
    %v831 = vadd.f32 0.0, %v830
    %832 = vdwg.mxu0
    %v834 = vsel %vm66, %v822, 0
    %v837 = vsel %vm66, %v825, 0
    %v840 = vsel %vm66, %v828, 0
    %v843 = vsel %vm66, %v831, 0
    %845 = vmatpush.msra.mxu0 0.0
    %846 = vmatpush.msra.mxu0 0.0
    %847 = vmatpush.msra.mxu0 0.0
    %848 = vmatpush.msra.mxu0 0.0
    %849 = vmatpush.msra.mxu0 0.0
    %850 = vmatpush.msra.mxu0 0.0
    %851 = vmatpush.msra.mxu0 0.0
    %852 = vmatpush.msra.mxu0 0.0
    %853 = vmatpush.msra.mxu0 0.0
    %854 = vmatpush.msra.mxu0 0.0
    %855 = vmatpush.msra.mxu0 0.0
    %856 = vmatpush.msra.mxu0 0.0
    %857 = vmatpush.msra.mxu0 %v774
    %858 = vmatpush.msra.mxu0 %v773
    %859 = vmatpush.msra.mxu0 %v772
    %860 = vmatpush.msra.mxu0 %v771
    %861 = vmatmul.f32.gmra.mxu0 %v834
    %v862 = vpop.f32.mrf.mxu0
    %v863 = vadd.f32 0.0, %v862
    %864 = vmatmul.f32.gmra.mxu0 %v837
    %v865 = vpop.f32.mrf.mxu0
    %866 = vmatmul.f32.gmra.mxu0 %v840
    %v867 = vpop.f32.mrf.mxu0
    %v868 = vadd.f32 0.0, %v867
    %869 = vmatmul.f32.gmra.mxu0 %v843
    %v870 = vpop.f32.mrf.mxu0
    %871 = vdwg.mxu0
    %v873 = vsel %vm66, %v793, 0
    %v876 = vsel %vm66, %v796, 0
    %v879 = vsel %vm66, %v799, 0
    %v882 = vsel %vm66, %v802, 0
    %884 = vmatpush.msra.mxu0 0.0
    %885 = vmatpush.msra.mxu0 0.0
    %886 = vmatpush.msra.mxu0 0.0
    %887 = vmatpush.msra.mxu0 0.0
    %888 = vmatpush.msra.mxu0 0.0
    %889 = vmatpush.msra.mxu0 0.0
    %890 = vmatpush.msra.mxu0 0.0
    %891 = vmatpush.msra.mxu0 0.0
    %892 = vmatpush.msra.mxu0 0.0
    %893 = vmatpush.msra.mxu0 0.0
    %894 = vmatpush.msra.mxu0 0.0
    %895 = vmatpush.msra.mxu0 0.0
    %896 = vmatpush.msra.mxu0 %v770
    %897 = vmatpush.msra.mxu0 %v769
    %898 = vmatpush.msra.mxu0 %v768
    %899 = vmatpush.msra.mxu0 %v767
    %900 = vmatmul.f32.gmra.mxu0 %v873
    %v901 = vpop.f32.mrf.mxu0
    %v902 = vadd.f32 %v863, %v901
    %903 = vmatmul.f32.gmra.mxu0 %v876
    %v904 = vpop.f32.mrf.mxu0
    %905 = vmatmul.f32.gmra.mxu0 %v879
    %v906 = vpop.f32.mrf.mxu0
    %v907 = vadd.f32 %v868, %v906
    %908 = vmatmul.f32.gmra.mxu0 %v882
    %v909 = vpop.f32.mrf.mxu0
    %910 = vdwg.mxu0
    %v911 = vperm.slane %v21, 0
    %v912 = vmul.f32 %v373, %v911
    %v913 = vmul.f32 %v379, %v911
    %v914 = vadd.f32 %v902, %v912
    %v915 = vadd.f32 %v907, %v913
    %v916 = vperm.slane %v21, 1
    %v917 = vmul.f32 %v397, %v916
    %v918 = vmul.f32 %v403, %v916
    %v919 = vadd.f32 %v914, %v917
    %v920 = vadd.f32 %v915, %v918
    %v921 = vmax.f32 %v919, 0.0
    %v922 = vmax.f32 %v920, 0.0
    %v923 = vadd.f32 %v765, %v921
    %v924 = vadd.f32 %v766, %v922
    %v925 = vmul.f32 %v923, 0.25
    %v926 = vmul.f32 %v924, 0.25
    %v927 = vperm.slane %v21, 2
    %v928 = vmul.f32 %v927, %v350
    %v929 = vmul.f32 %v927, %v355
    %v930 = vsub.f32 1.0, %v21
    %v931 = vperm.slane %v930, 2
    %v932 = vmul.f32 %v931, %v925
    %v933 = vmul.f32 %v931, %v926
    %v934 = vadd.f32 %v928, %v932
    %v935 = vadd.f32 %v929, %v933
    %936 = vst.msk [vmem:[#allocation2] sm:$0xff] %vm66, %v934
    %937 = vst.msk [vmem:[#allocation2 + $0x8] sm:$0xff] %vm66, %v935
    // Predicated region
    $region10: #{tpu_custom_call.1} parent=1 // pred_check
      _
    $region11: #{tpu_custom_call.1} parent=1 // pred_check_branch
      %939 = sbr.rel (0) target = $region13
    $region12: #{tpu_custom_call.1} parent=1 // pred_region
      %941 = vsyncadd [#allocation3], 0
      %s942 = sshll.u32 [#allocation2], 4
      %s943 = int_to_ptr.vmem [resolvable:$true] %s942
      %s944 = sshll.u32 %s2, 4
      %s945 = int_to_ptr.hbm [resolvable:$true] %s944
      %950 = dma.vmem_to_hbm [thread:$0]  %s943, 256, %s945, [#allocation3], 128, 128, 8
    $region13: #{tpu_custom_call.1} parent=1 // pred_fallthru
      _
    // Predicated region
    $region14: #{tpu_custom_call.1} parent=1 // pred_check
      _
    $region15: #{tpu_custom_call.1} parent=1 // pred_check_branch
      %952 = sbr.rel (0) target = $region17
    $region16: #{tpu_custom_call.1} parent=1 // pred_region
      %954 = dma.done [#allocation3], 256
    $region17: #{tpu_custom_call.1} parent=1 // pred_fallthru
      _
    %955 = vsyncpa [#allocation3], 1

</llo_original>
